<compile_context>
chip_gen: v7x
topology: tpu7x:2x2x1
jax: 0.10.0
libtpu: 0.0.40
codegen_flags: <defaults>
</compile_context>

<pallas_src>
import functools

import jax
import jax.numpy as jnp
from jax.experimental import pallas as pl
from jax.experimental.pallas import tpu as pltpu


_N_CHUNK = 128  # channel rows per depthwise/matmul chunk (bounds live ranges)


def _video_conv1d_kernel(x_ref, wd_ref, bd_ref, ws_ref, bs_ref,
                         skip_ref, y_ref, *, K, dilation, pad, n_chunk):
    # x_ref block: [BB, N, T] in the native HBM layout (no relayout anywhere).
    BB, N, T = x_ref.shape
    C = ws_ref.shape[0]
    x_dtype = x_ref.dtype
    mxu_dtype = ws_ref.dtype

    # Per-tap 0/1 edge masks (conv zero padding; also kills wrap-around from
    # the circular roll), built from an iota: no HBM mask input needed.
    t_idx = jax.lax.broadcasted_iota(jnp.int32, (1, 1, T), 2)
    taps = []
    for k in range(K):
        s = k * dilation - pad                      # tap source offset vs. t
        if s == 0:
            taps.append((s, None))
        else:
            valid = ((t_idx + s >= 0) & (t_idx + s < T)).astype(x_dtype)
            taps.append((s, valid))

    wd = wd_ref[...]                                # [N, K] f32 (resident)
    bd = bd_ref[...]                                # [N, 1] f32
    # 1x1 weights broadcast once into the batched-matmul layout (tiny).
    ws_b = jnp.broadcast_to(ws_ref[...][None], (BB, C, N))
    # skip accumulator in f32; sconv bias folded into the init.
    skip_acc = jnp.broadcast_to(bs_ref[...][None], (BB, C, T)).astype(jnp.float32)

    # N-chunked depthwise conv + partial 1x1 matmul: only one chunk's worth of
    # x / taps / acc is live at a time (avoids vreg spills for large N = H*W).
    for n0 in range(0, N, n_chunk):
        tn = min(n_chunk, N - n0)
        xc = x_ref[:, n0:n0 + tn, :]                # stays in x dtype (bf16-ready)

        # Depthwise conv over time: per-tap XLU roll + VPU MAC, f32 accumulate;
        # dconv bias is the accumulator init (no separate bias pass).
        acc = jnp.broadcast_to(bd[None, n0:n0 + tn, :],
                               (BB, tn, T)).astype(jnp.float32)
        for k, (s, valid) in enumerate(taps):
            if s == 0:
                tap = xc
            else:
                # roll keeps the time shift on the XLU; the mask zeroes lanes
                # whose tap source index falls outside [0, T).
                tap = pltpu.roll(xc, shift=(-s) % T, axis=2) * valid
            acc = acc + wd[None, n0:n0 + tn, k:k + 1] * tap

        y_ref[:, n0:n0 + tn, :] = acc.astype(y_ref.dtype)

        # Partial 1x1 (skip) conv on the MXU: batched [C, tn] @ [tn, T] per
        # batch element, f32 accumulation across chunks.
        skip_acc = skip_acc + jnp.einsum(
            "bcn,bnt->bct", ws_b[:, :, n0:n0 + tn], acc.astype(mxu_dtype),
            preferred_element_type=jnp.float32)

    skip_ref[...] = skip_acc.astype(skip_ref.dtype)


def _vmem_config():
    """Generation-aware VMEM sizing.

    vmem_limit_bytes = physical per-core VMEM minus ~16 MiB compiler headroom
    (v7x: 64 -> 48 MiB, v5e/v6e: 128 -> 112 MiB).  The block budget handed to
    the batch-fold chooser additionally reserves room for internal scratch.
    """
    try:
        cap = int(pltpu.get_tpu_info().vmem_capacity_bytes)
    except Exception:
        cap = 64 * 1024 * 1024          # conservative fallback (v7x per-TC VMEM)
    limit = max(cap - 16 * 1024 * 1024, 32 * 1024 * 1024)
    budget = int(limit * 0.8)
    return limit, budget


def _choose_batch_fold(B, N, C, T, K, itemsize, budget):
    """Pick BB = batch elements per grid step.

    Cost model = double-buffered pipelined blocks (x, y, skip) + in-kernel f32
    temps (one depthwise chunk + the [BB, C, T] skip accumulator) + weights.
    Prefer the largest BB that fits the budget while keeping >= 2 grid steps
    (v7x has two TensorCores; on single-TC v5e/v6e fatter steps are otherwise
    strictly better: fewer ~0.35 us step overheads and longer DMAs).
    """
    tn = min(_N_CHUNK, N)

    def cost(bb):
        blocks = 2 * itemsize * bb * T * (2 * N + C)       # dbl-buffered x/y/skip
        temps = 4 * bb * T * (3 * tn + C)                   # xc/tap/acc + skip acc
        weights = 8 * (N * K + N + C * N + C) + 4 * bb * C * N
        return blocks + temps + weights

    divisors = [bb for bb in range(1, B + 1) if B % bb == 0]
    fitting = [bb for bb in divisors if cost(bb) <= budget]
    if not fitting:
        return 1
    multi = [bb for bb in fitting if B // bb >= 2]
    return max(multi) if multi else max(fitting)


def video_conv1d(x, wd, bd, ws, bs, *, kernel_size, dilation=1, mxu_dtype=None):
    """VideoConv1D forward (first_block=True, skip_con=True).

    x  : [B, N, T]   (N = H*W video channels; convolution is over time T)
    wd : [N, K]  depthwise (dconv) weight, groups=N     bd : [N, 1] bias
    ws : [C, N]  1x1 skip (sconv) weight                bs : [C, 1] bias
    returns (skip [B, C, T_out], y [B, N, T_out])
    """
    B, N, T = x.shape
    C = ws.shape[0]
    K = kernel_size
    pad = dilation * (K - 1) // 2
    T_out = T + 2 * pad - dilation * (K - 1)

    # MXU operand dtype: bf16 when the data/weights already are bf16 (full-rate
    # MXU on v6e/v7x); f32 inputs keep f32 numerics unless explicitly forced.
    if mxu_dtype is None:
        mxu_dtype = jnp.bfloat16 if (x.dtype == jnp.bfloat16 or
                                     ws.dtype == jnp.bfloat16) else jnp.float32

    # Loop-invariant weights: cast once here, never per grid step in-kernel.
    wd_f = wd.astype(jnp.float32)
    bd_f = bd.astype(jnp.float32)
    bs_f = bs.astype(jnp.float32)
    ws_m = ws.astype(mxu_dtype)

    vmem_limit, budget = _vmem_config()
    BB = _choose_batch_fold(B, N, C, T, K, x.dtype.itemsize, budget)
    num_blocks = B // BB

    kern = functools.partial(_video_conv1d_kernel, K=K, dilation=dilation,
                             pad=pad, n_chunk=min(_N_CHUNK, N))

    skip, y = pl.pallas_call(
        kern,
        grid=(num_blocks,),
        in_specs=[
            pl.BlockSpec((BB, N, T), lambda j: (j, 0, 0)),   # x    (native layout)
            pl.BlockSpec((N, K), lambda j: (0, 0)),          # wd   (resident)
            pl.BlockSpec((N, 1), lambda j: (0, 0)),          # bd
            pl.BlockSpec((C, N), lambda j: (0, 0)),          # ws
            pl.BlockSpec((C, 1), lambda j: (0, 0)),          # bs
        ],
        out_specs=[
            pl.BlockSpec((BB, C, T), lambda j: (j, 0, 0)),   # skip (native layout)
            pl.BlockSpec((BB, N, T), lambda j: (j, 0, 0)),   # y
        ],
        out_shape=[
            jax.ShapeDtypeStruct((B, C, T), x.dtype),
            jax.ShapeDtypeStruct((B, N, T), x.dtype),
        ],
        compiler_params=pltpu.CompilerParams(
            dimension_semantics=("parallel",),
            vmem_limit_bytes=vmem_limit,
        ),
    )(x, wd_f, bd_f, ws_m, bs_f)

    if T_out != T:
        # Only hit when dilation*(kernel_size-1) is odd; the usual odd kernels
        # give exact "same" padding and skip this extra slice pass entirely.
        skip = skip[:, :, :T_out]
        y = y[:, :, :T_out]
    return skip, y


def _reference_forward(x, wd, bd, ws, bs, kernel_size, dilation):
    """Pure-JAX reference matching the PyTorch module semantics (NCT layout)."""
    B, N, T = x.shape
    pad = dilation * (kernel_size - 1) // 2
    y = jax.lax.conv_general_dilated(
        x, wd[:, None, :],                       # [out=N, in/group=1, K]
        window_strides=(1,), padding=((pad, pad),),
        rhs_dilation=(dilation,), feature_group_count=N,
        dimension_numbers=("NCH", "OIH", "NCH"),
        precision=jax.lax.Precision.HIGHEST)
    y = y + bd[None, :, :]
    skip = jnp.einsum("cn,bnt->bct", ws, y,
                      precision=jax.lax.Precision.HIGHEST) + bs[None, :, :]
    return skip, y


if __name__ == "__main__":
    # Small shapes: B=8, H=W=4 -> in_channels N=16, conv_channels C=32, T=128.
    # T=128 keeps output stores lane-dense; the fold chooser picks BB=4 -> a
    # 2-step parallel grid (both v7x TensorCores busy; pipelined on v5e/v6e).
    B, N, C, T = 8, 16, 32, 128
    K, dilation = 3, 1

    key = jax.random.PRNGKey(0)
    kx, kwd, kbd, kws, kbs = jax.random.split(key, 5)

    x = jax.random.normal(kx, (B, N, T), dtype=jnp.float32)
    wd = jax.random.normal(kwd, (N, K), dtype=jnp.float32) * 0.1   # dconv weight
    bd = jax.random.normal(kbd, (N, 1), dtype=jnp.float32) * 0.1   # dconv bias
    ws = jax.random.normal(kws, (C, N), dtype=jnp.float32) * 0.1   # sconv weight
    bs = jax.random.normal(kbs, (C, 1), dtype=jnp.float32) * 0.1   # sconv bias

    skip, y = video_conv1d(x, wd, bd, ws, bs, kernel_size=K, dilation=dilation)
    jax.block_until_ready((skip, y))

    skip_ref, y_ref = _reference_forward(x, wd, bd, ws, bs, K, dilation)
    assert skip.shape == (B, C, T) and y.shape == (B, N, T)
    err_y = float(jnp.max(jnp.abs(y - y_ref)))
    err_s = float(jnp.max(jnp.abs(skip - skip_ref)))
    # Depthwise path is f32 on the VPU (tight); the 1x1 conv goes through the
    # MXU which may use a reduced-precision multi-pass scheme for f32 operands.
    assert err_y < 1e-4, err_y
    assert err_s < 5e-3, err_s
    print("KERNEL_OK")
</pallas_src>

<mosaic_0001>
module attributes {stable_mosaic.version = 11 : i64} {
  func.func @_video_conv1d_kernel(%arg0: i32, %arg1: memref<4x16x128xf32, #tpu.memory_space<vmem>>, %arg2: memref<16x3xf32, #tpu.memory_space<vmem>>, %arg3: memref<16x1xf32, #tpu.memory_space<vmem>>, %arg4: memref<32x16xf32, #tpu.memory_space<vmem>>, %arg5: memref<32x1xf32, #tpu.memory_space<vmem>>, %arg6: memref<4x32x128xf32, #tpu.memory_space<vmem>>, %arg7: memref<4x16x128xf32, #tpu.memory_space<vmem>>) attributes {dimension_semantics = [#tpu.dimension_semantics<parallel>], iteration_bounds = array<i64: 2>, scalar_prefetch = 0 : i64, scratch_operands = 0 : i64, tpu.core_type = #tpu.core_type<tc>, window_params = [{transform_indices = @transform_0, window_bounds = array<i64: 4, 16, 128>}, {pipeline_mode = #tpu.pipeline_mode<synchronous>, transform_indices = @transform_1, window_bounds = array<i64: 16, 3>}, {pipeline_mode = #tpu.pipeline_mode<synchronous>, transform_indices = @transform_2, window_bounds = array<i64: 16, 1>}, {pipeline_mode = #tpu.pipeline_mode<synchronous>, transform_indices = @transform_3, window_bounds = array<i64: 32, 16>}, {pipeline_mode = #tpu.pipeline_mode<synchronous>, transform_indices = @transform_4, window_bounds = array<i64: 32, 1>}, {transform_indices = @transform_5, window_bounds = array<i64: 4, 32, 128>}, {transform_indices = @transform_6, window_bounds = array<i64: 4, 16, 128>}]} {
    %0 = tpu.iota {dimensions = array<i32: 2>} : vector<1x1x128xi32>
    %c-1_i32 = arith.constant -1 : i32
    %1 = vector.broadcast %c-1_i32 : i32 to vector<1x1x128xi32>
    %2 = arith.addi %0, %1 : vector<1x1x128xi32>
    %c0_i32 = arith.constant 0 : i32
    %3 = vector.broadcast %c0_i32 : i32 to vector<1x1x128xi32>
    %4 = arith.cmpi sge, %2, %3 : vector<1x1x128xi32>
    %c-1_i32_0 = arith.constant -1 : i32
    %5 = vector.broadcast %c-1_i32_0 : i32 to vector<1x1x128xi32>
    %6 = arith.addi %0, %5 : vector<1x1x128xi32>
    %c128_i32 = arith.constant 128 : i32
    %7 = vector.broadcast %c128_i32 : i32 to vector<1x1x128xi32>
    %8 = arith.cmpi slt, %6, %7 : vector<1x1x128xi32>
    %9 = arith.andi %4, %8 : vector<1x1x128xi1>
    %10 = arith.extui %9 : vector<1x1x128xi1> to vector<1x1x128xi32>
    %11 = arith.sitofp %10 : vector<1x1x128xi32> to vector<1x1x128xf32>
    %c1_i32 = arith.constant 1 : i32
    %12 = vector.broadcast %c1_i32 : i32 to vector<1x1x128xi32>
    %13 = arith.addi %0, %12 : vector<1x1x128xi32>
    %c0_i32_1 = arith.constant 0 : i32
    %14 = vector.broadcast %c0_i32_1 : i32 to vector<1x1x128xi32>
    %15 = arith.cmpi sge, %13, %14 : vector<1x1x128xi32>
    %c1_i32_2 = arith.constant 1 : i32
    %16 = vector.broadcast %c1_i32_2 : i32 to vector<1x1x128xi32>
    %17 = arith.addi %0, %16 : vector<1x1x128xi32>
    %c128_i32_3 = arith.constant 128 : i32
    %18 = vector.broadcast %c128_i32_3 : i32 to vector<1x1x128xi32>
    %19 = arith.cmpi slt, %17, %18 : vector<1x1x128xi32>
    %20 = arith.andi %15, %19 : vector<1x1x128xi1>
    %21 = arith.extui %20 : vector<1x1x128xi1> to vector<1x1x128xi32>
    %22 = arith.sitofp %21 : vector<1x1x128xi32> to vector<1x1x128xf32>
    %c0 = arith.constant 0 : index
    %c0_4 = arith.constant 0 : index
    %23 = vector.load %arg2[%c0, %c0_4] : memref<16x3xf32, #tpu.memory_space<vmem>>, vector<16x3xf32>
    %c0_5 = arith.constant 0 : index
    %c0_6 = arith.constant 0 : index
    %24 = vector.load %arg3[%c0_5, %c0_6] : memref<16x1xf32, #tpu.memory_space<vmem>>, vector<16x1xf32>
    %c0_7 = arith.constant 0 : index
    %c0_8 = arith.constant 0 : index
    %25 = vector.load %arg4[%c0_7, %c0_8] : memref<32x16xf32, #tpu.memory_space<vmem>>, vector<32x16xf32>
    %26 = vector.shape_cast %25 : vector<32x16xf32> to vector<1x32x16xf32>
    %27 = vector.shape_cast %26 : vector<1x32x16xf32> to vector<1x32x16xf32>
    %28 = vector.broadcast %27 : vector<1x32x16xf32> to vector<4x32x16xf32>
    %c0_9 = arith.constant 0 : index
    %c0_10 = arith.constant 0 : index
    %29 = vector.load %arg5[%c0_9, %c0_10] : memref<32x1xf32, #tpu.memory_space<vmem>>, vector<32x1xf32>
    %30 = vector.shape_cast %29 : vector<32x1xf32> to vector<1x32x1xf32>
    %31 = vector.shape_cast %30 : vector<1x32x1xf32> to vector<1x32x1xf32>
    %32 = vector.broadcast %31 : vector<1x32x1xf32> to vector<4x32x128xf32>
    %c0_11 = arith.constant 0 : index
    %c0_12 = arith.constant 0 : index
    %c0_13 = arith.constant 0 : index
    %33 = vector.load %arg1[%c0_11, %c0_12, %c0_13] : memref<4x16x128xf32, #tpu.memory_space<vmem>>, vector<4x16x128xf32>
    %34 = vector.shape_cast %24 : vector<16x1xf32> to vector<1x16x1xf32>
    %35 = vector.shape_cast %34 : vector<1x16x1xf32> to vector<1x16x1xf32>
    %36 = vector.broadcast %35 : vector<1x16x1xf32> to vector<4x16x128xf32>
    %c1_i32_14 = arith.constant 1 : i32
    %37 = tpu.dynamic_rotate %33 by %c1_i32_14 dim 2 : vector<4x16x128xf32>, i32 -> vector<4x16x128xf32>
    %38 = vector.broadcast %11 : vector<1x1x128xf32> to vector<4x16x128xf32>
    %39 = arith.mulf %37, %38 : vector<4x16x128xf32>
    %40 = vector.extract_strided_slice %23 {offsets = [0, 0], sizes = [16, 1], strides = [1, 1]} : vector<16x3xf32> to vector<16x1xf32>
    %41 = vector.shape_cast %40 : vector<16x1xf32> to vector<1x16x1xf32>
    %42 = vector.broadcast %41 : vector<1x16x1xf32> to vector<4x16x128xf32>
    %43 = arith.mulf %42, %39 : vector<4x16x128xf32>
    %44 = arith.addf %36, %43 : vector<4x16x128xf32>
    %45 = vector.extract_strided_slice %23 {offsets = [0, 1], sizes = [16, 1], strides = [1, 1]} : vector<16x3xf32> to vector<16x1xf32>
    %46 = vector.shape_cast %45 : vector<16x1xf32> to vector<1x16x1xf32>
    %47 = vector.broadcast %46 : vector<1x16x1xf32> to vector<4x16x128xf32>
    %48 = arith.mulf %47, %33 : vector<4x16x128xf32>
    %49 = arith.addf %44, %48 : vector<4x16x128xf32>
    %c127_i32 = arith.constant 127 : i32
    %50 = tpu.dynamic_rotate %33 by %c127_i32 dim 2 : vector<4x16x128xf32>, i32 -> vector<4x16x128xf32>
    %51 = vector.broadcast %22 : vector<1x1x128xf32> to vector<4x16x128xf32>
    %52 = arith.mulf %50, %51 : vector<4x16x128xf32>
    %53 = vector.extract_strided_slice %23 {offsets = [0, 2], sizes = [16, 1], strides = [1, 1]} : vector<16x3xf32> to vector<16x1xf32>
    %54 = vector.shape_cast %53 : vector<16x1xf32> to vector<1x16x1xf32>
    %55 = vector.broadcast %54 : vector<1x16x1xf32> to vector<4x16x128xf32>
    %56 = arith.mulf %55, %52 : vector<4x16x128xf32>
    %57 = arith.addf %49, %56 : vector<4x16x128xf32>
    %c0_15 = arith.constant 0 : index
    %c0_16 = arith.constant 0 : index
    %c0_17 = arith.constant 0 : index
    %58 = vector.load %arg7[%c0_15, %c0_16, %c0_17] : memref<4x16x128xf32, #tpu.memory_space<vmem>>, vector<4x16x128xf32>
    tpu.vector_store %arg7[%c0_15, %c0_16, %c0_17], %57 {strides = array<i32>} : memref<4x16x128xf32, #tpu.memory_space<vmem>>, vector<4x16x128xf32>,
    "tpu.trace_start"() <{level = 10 : i32, message = "bcn,bnt->bct"}> : () -> ()
    %cst = arith.constant dense<0.000000e+00> : vector<4x32x128xf32>
    %59 = tpu.matmul %28, %57, %cst {dimension_numbers = #tpu.dot_dimension_numbers<[2], [1], [1], [2], [0, 0, 0, 1, 1, 2], [0], [0]>} : vector<4x32x16xf32>, vector<4x16x128xf32>, vector<4x32x128xf32> -> vector<4x32x128xf32>
    "tpu.trace_stop"() : () -> ()
    %60 = arith.addf %32, %59 : vector<4x32x128xf32>
    %c0_18 = arith.constant 0 : index
    %c0_19 = arith.constant 0 : index
    %c0_20 = arith.constant 0 : index
    %61 = vector.load %arg6[%c0_18, %c0_19, %c0_20] : memref<4x32x128xf32, #tpu.memory_space<vmem>>, vector<4x32x128xf32>
    tpu.vector_store %arg6[%c0_18, %c0_19, %c0_20], %60 {strides = array<i32>} : memref<4x32x128xf32, #tpu.memory_space<vmem>>, vector<4x32x128xf32>,
    return
  }
  func.func @transform_0(%arg0: i32) -> (i32, i32, i32) {
    %c0_i32 = arith.constant 0 : i32
    %c0_i32_0 = arith.constant 0 : i32
    %c0_i32_1 = arith.constant 0 : i32
    return %arg0, %c0_i32, %c0_i32_0 : i32, i32, i32
  }
  func.func @transform_1(%arg0: i32) -> (i32, i32) {
    %c0_i32 = arith.constant 0 : i32
    %c0_i32_0 = arith.constant 0 : i32
    %c0_i32_1 = arith.constant 0 : i32
    return %c0_i32, %c0_i32_0 : i32, i32
  }
  func.func @transform_2(%arg0: i32) -> (i32, i32) {
    %c0_i32 = arith.constant 0 : i32
    %c0_i32_0 = arith.constant 0 : i32
    %c0_i32_1 = arith.constant 0 : i32
    return %c0_i32, %c0_i32_0 : i32, i32
  }
  func.func @transform_3(%arg0: i32) -> (i32, i32) {
    %c0_i32 = arith.constant 0 : i32
    %c0_i32_0 = arith.constant 0 : i32
    %c0_i32_1 = arith.constant 0 : i32
    return %c0_i32, %c0_i32_0 : i32, i32
  }
  func.func @transform_4(%arg0: i32) -> (i32, i32) {
    %c0_i32 = arith.constant 0 : i32
    %c0_i32_0 = arith.constant 0 : i32
    %c0_i32_1 = arith.constant 0 : i32
    return %c0_i32, %c0_i32_0 : i32, i32
  }
  func.func @transform_5(%arg0: i32) -> (i32, i32, i32) {
    %c0_i32 = arith.constant 0 : i32
    %c0_i32_0 = arith.constant 0 : i32
    %c0_i32_1 = arith.constant 0 : i32
    return %arg0, %c0_i32, %c0_i32_0 : i32, i32, i32
  }
  func.func @transform_6(%arg0: i32) -> (i32, i32, i32) {
    %c0_i32 = arith.constant 0 : i32
    %c0_i32_0 = arith.constant 0 : i32
    %c0_i32_1 = arith.constant 0 : i32
    return %arg0, %c0_i32, %c0_i32_0 : i32, i32, i32
  }
}

</mosaic_0001>

<llo_original>
// kernel: tpu_custom_call.1
$region0: #{tpu_custom_call.1}
  #allocation0 [shape = 'u32[]', space=smem, size = 0x4, offset = 0x4, fixed_abs, tag = 'smem constant byte address 0x4 - core index']
  #allocation1 [shape = 'u32[144,128]{1,0:T(1,128)}', space=vmem, size = 0x12000, scoped, tag = 'internal scratch']
  %s0 = inlined_call_operand.hbm [shape: f32[8,16,128], index: 0, kind: input, shape index: {}]
  %s1 = inlined_call_operand.vmem [shape: f32[16,3], index: 1, kind: input, shape index: {}]
  %s2 = inlined_call_operand.vmem [shape: f32[16,1], index: 2, kind: input, shape index: {}]
  %s3 = inlined_call_operand.vmem [shape: f32[32,16], index: 3, kind: input, shape index: {}]
  %s4 = inlined_call_operand.vmem [shape: f32[32,1], index: 4, kind: input, shape index: {}]
  %s5 = inlined_call_operand.hbm [shape: f32[8,32,128], index: 5, kind: output, shape index: {0}]
  %s6 = inlined_call_operand.hbm [shape: f32[8,16,128], index: 6, kind: output, shape index: {1}]
  %7 = xla_tuple %s5, %s6
  %s8 = sld [smem:[#allocation0]]
  $region65: #{tpu_custom_call.1} parent=0
    _
  %s10 = ssub.s32 1, %s8
  %s11 = scalar_select 0, %s10, %s8
  $region1: #{tpu_custom_call.1} parent=0
    #allocation2 [shape = 'u8[65536]{0}', space=vmem, size = 0x10000, scoped, tag = 'input window, operand 0']
    #allocation3 [shape = 's32[2]{0}', space=sflag, size = 0x8, scoped, tag = 'scoped memory for tpu_custom_call.1']
    #allocation4 [shape = 's32[2]{0}', space=sflag, size = 0x8, scoped, tag = 'scoped memory for tpu_custom_call.1']
    #allocation5 [shape = 'u8[131072]{0}', space=vmem, size = 0x20000, scoped, tag = 'output window, operand 0']
    #allocation6 [shape = 'u8[65536]{0}', space=vmem, size = 0x10000, scoped, tag = 'output window, operand 1']
    #allocation7 [shape = 's32[2]{0}', space=sflag, size = 0x8, scoped, tag = 'scoped memory for tpu_custom_call.1']
    %12 = vsyncpa [#allocation3], 0
    %s13 = scalar_lea.sflag [#allocation3], 1
    %14 = vsyncpa %s13, 0
    %15 = vsyncpa [#allocation4], 0
    %s16 = scalar_lea.sflag [#allocation4], 1
    %17 = vsyncpa %s16, 0
    %18 = vsyncpa [#allocation7], 0
    %s19 = scalar_lea.sflag [#allocation7], 1
    %20 = vsyncpa %s19, 0
    loop: start=0, step=1, limit=4
    $region2: #{tpu_custom_call.1} parent=1 // loop_pre_header
      _
    $region3: #{tpu_custom_call.1} parent=1 // loop_header
      %s22 = sphi 0, %s26
      %p23 = scmp.ge.s32.totalorder %s22, 4
      %s32 = sphi 0, %s34
      %s35 = sphi 0, %s32
      %s36 = sphi 0, %s35
      %s52 = sphi 0, %s36
      %s56 = sphi 0, %s56
      %s58 = sphi 0, %s56
      %s59 = sphi 0, %s58
      %s73 = sphi 0, %s59
      %s77 = sphi 0, %s77
      %s79 = sphi 0, %s77
      %s80 = sphi 0, %s79
      %s94 = sphi 0, %s80
      %s98 = sphi 0, %s98
      %s100 = sphi 0, %s98
      %s101 = sphi 0, %s100
      %s115 = sphi 0, %s101
      %s119 = sphi 0, %s119
      %s121 = sphi 0, %s119
      %s122 = sphi 0, %s121
      %s136 = sphi 0, %s122
      %s142 = sphi 0, %s144
      %s145 = sphi 0, %s142
      %s146 = sphi 0, %s145
      %s162 = sphi 0, %s146
      %s168 = sphi 0, %s170
      %s171 = sphi 0, %s168
      %s172 = sphi 0, %s171
      %s188 = sphi 0, %s172
    $region4: #{tpu_custom_call.1} parent=1 // loop_header_branch
      %25 = sbr.rel (%p23) target = $region8
    $region5: #{tpu_custom_call.1} parent=1 // loop_body
      %s27 = ssub.s32 %s22, 1
      %s28 = ssub.s32 %s22, 2
      %s29 = sadd.s32 %s22, 1
      %s30 = ssub.s32 %s22, %s29
      %p31 = scmp.eq.s32.totalorder %s30, 0
      %s33 = sadd.s32 %s32, 1
      %s34 = scalar_select %p31, %s32, %s33
      %p37 = pneg %p31
      %p38 = scmp.eq.s32.totalorder %s22, 1
      %p39 = por %p37, %p38
      %p40 = scmp.ne.s32.totalorder %s32, %s35
      %p41 = scmp.eq.s32.totalorder %s22, 0
      %p42 = por %p40, %p41
      %p43 = scmp.ne.s32.totalorder %s32, %s35
      %p44 = scmp.eq.s32.totalorder %s27, 1
      %p45 = por %p43, %p44
      %p46 = scmp.ne.s32.totalorder %s35, %s36
      %p47 = scmp.eq.s32.totalorder %s27, 0
      %p48 = por %p46, %p47
      %p49 = scmp.ne.s32.totalorder %s35, %s36
      %p50 = scmp.eq.s32.totalorder %s28, 1
      %p51 = por %p49, %p50
      %p53 = scmp.ne.s32.totalorder %s36, %s52
      %p54 = scmp.eq.s32.totalorder %s28, 0
      %p55 = por %p53, %p54
      %s57 = sadd.s32 %s56, 1
      %p60 = scmp.eq.s32.totalorder %s22, 1
      %p61 = scmp.ne.s32.totalorder %s56, %s58
      %p62 = scmp.eq.s32.totalorder %s22, 0
      %p63 = por %p61, %p62
      %p64 = scmp.ne.s32.totalorder %s56, %s58
      %p65 = scmp.eq.s32.totalorder %s27, 1
      %p66 = por %p64, %p65
      %p67 = scmp.ne.s32.totalorder %s58, %s59
      %p68 = scmp.eq.s32.totalorder %s27, 0
      %p69 = por %p67, %p68
      %p70 = scmp.ne.s32.totalorder %s58, %s59
      %p71 = scmp.eq.s32.totalorder %s28, 1
      %p72 = por %p70, %p71
      %p74 = scmp.ne.s32.totalorder %s59, %s73
      %p75 = scmp.eq.s32.totalorder %s28, 0
      %p76 = por %p74, %p75
      %s78 = sadd.s32 %s77, 1
      %p81 = scmp.eq.s32.totalorder %s22, 1
      %p82 = scmp.ne.s32.totalorder %s77, %s79
      %p83 = scmp.eq.s32.totalorder %s22, 0
      %p84 = por %p82, %p83
      %p85 = scmp.ne.s32.totalorder %s77, %s79
      %p86 = scmp.eq.s32.totalorder %s27, 1
      %p87 = por %p85, %p86
      %p88 = scmp.ne.s32.totalorder %s79, %s80
      %p89 = scmp.eq.s32.totalorder %s27, 0
      %p90 = por %p88, %p89
      %p91 = scmp.ne.s32.totalorder %s79, %s80
      %p92 = scmp.eq.s32.totalorder %s28, 1
      %p93 = por %p91, %p92
      %p95 = scmp.ne.s32.totalorder %s80, %s94
      %p96 = scmp.eq.s32.totalorder %s28, 0
      %p97 = por %p95, %p96
      %s99 = sadd.s32 %s98, 1
      %p102 = scmp.eq.s32.totalorder %s22, 1
      %p103 = scmp.ne.s32.totalorder %s98, %s100
      %p104 = scmp.eq.s32.totalorder %s22, 0
      %p105 = por %p103, %p104
      %p106 = scmp.ne.s32.totalorder %s98, %s100
      %p107 = scmp.eq.s32.totalorder %s27, 1
      %p108 = por %p106, %p107
      %p109 = scmp.ne.s32.totalorder %s100, %s101
      %p110 = scmp.eq.s32.totalorder %s27, 0
      %p111 = por %p109, %p110
      %p112 = scmp.ne.s32.totalorder %s100, %s101
      %p113 = scmp.eq.s32.totalorder %s28, 1
      %p114 = por %p112, %p113
      %p116 = scmp.ne.s32.totalorder %s101, %s115
      %p117 = scmp.eq.s32.totalorder %s28, 0
      %p118 = por %p116, %p117
      %s120 = sadd.s32 %s119, 1
      %p123 = scmp.eq.s32.totalorder %s22, 1
      %p124 = scmp.ne.s32.totalorder %s119, %s121
      %p125 = scmp.eq.s32.totalorder %s22, 0
      %p126 = por %p124, %p125
      %p127 = scmp.ne.s32.totalorder %s119, %s121
      %p128 = scmp.eq.s32.totalorder %s27, 1
      %p129 = por %p127, %p128
      %p130 = scmp.ne.s32.totalorder %s121, %s122
      %p131 = scmp.eq.s32.totalorder %s27, 0
      %p132 = por %p130, %p131
      %p133 = scmp.ne.s32.totalorder %s121, %s122
      %p134 = scmp.eq.s32.totalorder %s28, 1
      %p135 = por %p133, %p134
      %p137 = scmp.ne.s32.totalorder %s122, %s136
      %p138 = scmp.eq.s32.totalorder %s28, 0
      %p139 = por %p137, %p138
      %s140 = ssub.s32 %s22, %s29
      %p141 = scmp.eq.s32.totalorder %s140, 0
      %s143 = sadd.s32 %s142, 1
      %s144 = scalar_select %p141, %s142, %s143
      %p147 = pneg %p141
      %p148 = scmp.eq.s32.totalorder %s22, 1
      %p149 = por %p147, %p148
      %p150 = scmp.ne.s32.totalorder %s142, %s145
      %p151 = scmp.eq.s32.totalorder %s22, 0
      %p152 = por %p150, %p151
      %p153 = scmp.ne.s32.totalorder %s142, %s145
      %p154 = scmp.eq.s32.totalorder %s27, 1
      %p155 = por %p153, %p154
      %p156 = scmp.ne.s32.totalorder %s145, %s146
      %p157 = scmp.eq.s32.totalorder %s27, 0
      %p158 = por %p156, %p157
      %p159 = scmp.ne.s32.totalorder %s145, %s146
      %p160 = scmp.eq.s32.totalorder %s28, 1
      %p161 = por %p159, %p160
      %p163 = scmp.ne.s32.totalorder %s146, %s162
      %p164 = scmp.eq.s32.totalorder %s28, 0
      %p165 = por %p163, %p164
      %s166 = ssub.s32 %s22, %s29
      %p167 = scmp.eq.s32.totalorder %s166, 0
      %s169 = sadd.s32 %s168, 1
      %s170 = scalar_select %p167, %s168, %s169
      %p173 = pneg %p167
      %p174 = scmp.eq.s32.totalorder %s22, 1
      %p175 = por %p173, %p174
      %p176 = scmp.ne.s32.totalorder %s168, %s171
      %p177 = scmp.eq.s32.totalorder %s22, 0
      %p178 = por %p176, %p177
      %p179 = scmp.ne.s32.totalorder %s168, %s171
      %p180 = scmp.eq.s32.totalorder %s27, 1
      %p181 = por %p179, %p180
      %p182 = scmp.ne.s32.totalorder %s171, %s172
      %p183 = scmp.eq.s32.totalorder %s27, 0
      %p184 = por %p182, %p183
      %p185 = scmp.ne.s32.totalorder %s171, %s172
      %p186 = scmp.eq.s32.totalorder %s28, 1
      %p187 = por %p185, %p186
      %p189 = scmp.ne.s32.totalorder %s172, %s188
      %p190 = scmp.eq.s32.totalorder %s28, 0
      %p191 = por %p189, %p190
      %p192 = scmp.le.s32.totalorder 1, %s22
      %p193 = scmp.lt.s32.totalorder %s22, 3
      %p194 = pnand %p192, %p193
      %p195 = pneg %p194
      // Predicated region
      $region9: #{tpu_custom_call.1} parent=5 // pred_check
        _
      $region10: #{tpu_custom_call.1} parent=5 // pred_check_branch
        %197 = sbr.rel (%p194) target = $region12
      $region11: #{tpu_custom_call.1} parent=5 // pred_region
        %s198 = ssub.s32 %s22, 1
        // Predicated region
        $region13: #{tpu_custom_call.1} parent=11 // pred_check
          %p199 = pneg %p69
        $region14: #{tpu_custom_call.1} parent=11 // pred_check_branch
          %201 = sbr.rel (%p199) target = $region16
        $region15: #{tpu_custom_call.1} parent=11 // pred_region
          _
        $region16: #{tpu_custom_call.1} parent=11 // pred_fallthru
          _
        // Predicated region
        $region17: #{tpu_custom_call.1} parent=11 // pred_check
          %p202 = pneg %p90
        $region18: #{tpu_custom_call.1} parent=11 // pred_check_branch
          %204 = sbr.rel (%p202) target = $region20
        $region19: #{tpu_custom_call.1} parent=11 // pred_region
          _
        $region20: #{tpu_custom_call.1} parent=11 // pred_fallthru
          _
        // Predicated region
        $region21: #{tpu_custom_call.1} parent=11 // pred_check
          %p205 = pneg %p111
        $region22: #{tpu_custom_call.1} parent=11 // pred_check_branch
          %207 = sbr.rel (%p205) target = $region24
        $region23: #{tpu_custom_call.1} parent=11 // pred_region
          _
        $region24: #{tpu_custom_call.1} parent=11 // pred_fallthru
          _
        // Predicated region
        $region25: #{tpu_custom_call.1} parent=11 // pred_check
          %p208 = pneg %p132
        $region26: #{tpu_custom_call.1} parent=11 // pred_check_branch
          %210 = sbr.rel (%p208) target = $region28
        $region27: #{tpu_custom_call.1} parent=11 // pred_region
          _
        $region28: #{tpu_custom_call.1} parent=11 // pred_fallthru
          _
      $region12: #{tpu_custom_call.1} parent=5 // pred_fallthru
        _
      %p211 = scmp.lt.s32.totalorder %s22, 2
      // Predicated region
      $region29: #{tpu_custom_call.1} parent=5 // pred_check
        %p212 = pneg %p211
      $region30: #{tpu_custom_call.1} parent=5 // pred_check_branch
        %214 = sbr.rel (%p212) target = $region32
      $region31: #{tpu_custom_call.1} parent=5 // pred_region
        // Predicated region
        $region33: #{tpu_custom_call.1} parent=31 // pred_check
          %p215 = pneg %p42
        $region34: #{tpu_custom_call.1} parent=31 // pred_check_branch
          %217 = sbr.rel (%p215) target = $region36
        $region35: #{tpu_custom_call.1} parent=31 // pred_region
          %s218 = sand.u32 %s32, 1
          %s219 = scalar_lea.sflag [#allocation3], %s218
          %s220 = sand.u32 %s32, 1
          %s221 = smul.addr %s220, 64
          %s222 = scalar_lea.vmem [#allocation2], %s221
          %s223 = smul.u32 4, %s22
          %s225 = ssub.s32 1024, 1024
          %226 = vsyncadd %s219, %s225
          %s227 = smul.addr %s223, 2
          %s228 = smul.addr %s227, 128
          %s229 = scalar_lea.hbm %s0, %s228
          %s230 = sshll.u32 %s222, 4
          %s231 = int_to_ptr.vmem [resolvable:$true] %s230
          %236 = dma.hbm_to_vmem [thread:$0]  %s229, 1024, %s231, %s219, 128, 128, 8
        $region36: #{tpu_custom_call.1} parent=31 // pred_fallthru
          _
      $region32: #{tpu_custom_call.1} parent=5 // pred_fallthru
        _
      %p237 = scmp.le.s32.totalorder 1, %s22
      %p238 = scmp.lt.s32.totalorder %s22, 3
      %p239 = pnand %p237, %p238
      %p240 = pneg %p239
      // Predicated region
      $region37: #{tpu_custom_call.1} parent=5 // pred_check
        _
      $region38: #{tpu_custom_call.1} parent=5 // pred_check_branch
        %242 = sbr.rel (%p239) target = $region40
      $region39: #{tpu_custom_call.1} parent=5 // pred_region
        %s243 = ssub.s32 %s22, 1
        %s244 = sand.u32 %s35, 1
        %s245 = scalar_lea.sflag [#allocation3], %s244
        %s246 = sand.u32 %s35, 1
        %s247 = smul.addr %s246, 64
        %s248 = scalar_lea.vmem [#allocation2], %s247
        // Predicated region
        $region41: #{tpu_custom_call.1} parent=39 // pred_check
          %p249 = pneg %p48
        $region42: #{tpu_custom_call.1} parent=39 // pred_check_branch
          %251 = sbr.rel (%p249) target = $region44
        $region43: #{tpu_custom_call.1} parent=39 // pred_region
          %252 = dma.done %s245, 1024
        $region44: #{tpu_custom_call.1} parent=39 // pred_fallthru
          _
        %s253 = sand.u32 %s35, 1
        %s254 = scalar_lea.sflag [#allocation3], %s253
        %s255 = sand.u32 %s35, 1
        %s256 = smul.addr %s255, 64
        %s257 = scalar_lea.vmem [#allocation2], %s256
        %p258 = pneg %p48
        %p259 = pneg %p45
        %p260 = pneg %p69
        %p261 = pneg %p66
        %p262 = pneg %p90
        %p263 = pneg %p87
        %p264 = pneg %p111
        %p265 = pneg %p108
        %p266 = pneg %p132
        %p267 = pneg %p129
        %p268 = pneg %p158
        %p269 = pneg %p155
        %s270 = sand.u32 %s145, 1
        %s271 = scalar_lea.sflag [#allocation4], %s270
        %s272 = sand.u32 %s145, 1
        %s273 = smul.addr %s272, 128
        %s274 = scalar_lea.vmem [#allocation5], %s273
        %p275 = pneg %p184
        %p276 = pneg %p181
        %s277 = sand.u32 %s171, 1
        %s278 = scalar_lea.sflag [#allocation7], %s277
        %s279 = sand.u32 %s171, 1
        %s280 = smul.addr %s279, 64
        %s281 = scalar_lea.vmem [#allocation6], %s280
        %s282 = smul.u32 4, %s27
        %s283 = smul.u32 4, %s27
        %s284 = smul.u32 4, %s27
        %v285 = vlaneseq
        %v286 = vand.u32 %v285, 127
        %v287 = vadd.s32 %v286, 4294967295
        %vm288 = vcmp.ge.s32.totalorder %v287, 0
        %vm289 = vcmp.lt.s32.totalorder %v287, 128
        %vm290 = vmand %vm288, %vm289
        %v291 = vsel %vm290, 1, 0
        %v292 = vcvt.s32.f32 %v291
        %v293 = vadd.s32 %v286, 1
        %vm294 = vcmp.ge.s32.totalorder %v293, 0
        %vm295 = vcmp.lt.s32.totalorder %v293, 128
        %vm296 = vmand %vm294, %vm295
        %v297 = vsel %vm296, 1, 0
        %v298 = vcvt.s32.f32 %v297
        %v299 = vld [vmem:[%s1] sm:$0xff]
        %v300 = vld [vmem:[%s1 + $0x8] sm:$0xff]
        %v301 = vld [vmem:[%s2] sm:$0xff]
        %v302 = vld [vmem:[%s2 + $0x8] sm:$0xff]
        %v303 = vld [vmem:[%s3] sm:$0xff]
        %v304 = vld [vmem:[%s3 + $0x8] sm:$0xff]
        %v305 = vld [vmem:[%s3 + $0x10] sm:$0xff]
        %v306 = vld [vmem:[%s3 + $0x18] sm:$0xff]
        %v307 = vld [vmem:[%s4] sm:$0xff]
        %v308 = vld [vmem:[%s4 + $0x8] sm:$0xff]
        %v309 = vld [vmem:[%s4 + $0x10] sm:$0xff]
        %v310 = vld [vmem:[%s4 + $0x18] sm:$0xff]
        %312 = vset.pattern.permute.xlu0 0
        %313 = vperm.xlu0 %312, %v307
        %v314 = vpop.permute.xlu0 %313
        %317 = vset.pattern.permute.xlu0 0
        %318 = vperm.xlu0 %317, %v308
        %v319 = vpop.permute.xlu0 %318
        %322 = vset.pattern.permute.xlu0 0
        %323 = vperm.xlu0 %322, %v309
        %v324 = vpop.permute.xlu0 %323
        %327 = vset.pattern.permute.xlu0 0
        %328 = vperm.xlu0 %327, %v310
        %v329 = vpop.permute.xlu0 %328
        %v331 = vld [vmem:[%s248] sm:$0xff]
        %v332 = vld [vmem:[%s248 + $0x8] sm:$0xff]
        %v333 = vld [vmem:[%s248 + $0x10] sm:$0xff]
        %v334 = vld [vmem:[%s248 + $0x18] sm:$0xff]
        %v335 = vld [vmem:[%s248 + $0x20] sm:$0xff]
        %v336 = vld [vmem:[%s248 + $0x28] sm:$0xff]
        %v337 = vld [vmem:[%s248 + $0x30] sm:$0xff]
        %v338 = vld [vmem:[%s248 + $0x38] sm:$0xff]
        %340 = vset.pattern.permute.xlu0 0
        %341 = vperm.xlu0 %340, %v301
        %v342 = vpop.permute.xlu0 %341
        %345 = vset.pattern.permute.xlu0 0
        %346 = vperm.xlu0 %345, %v302
        %v347 = vpop.permute.xlu0 %346
        %349 = vrot.lane.b32.xlu0 %v331, 1
        %v350 = vpop.permute.xlu0 %349
        %351 = vrot.lane.b32.xlu0 %v332, 1
        %v352 = vpop.permute.xlu0 %351
        %353 = vrot.lane.b32.xlu0 %v333, 1
        %v354 = vpop.permute.xlu0 %353
        %355 = vrot.lane.b32.xlu0 %v334, 1
        %v356 = vpop.permute.xlu0 %355
        %357 = vrot.lane.b32.xlu0 %v335, 1
        %v358 = vpop.permute.xlu0 %357
        %359 = vrot.lane.b32.xlu0 %v336, 1
        %v360 = vpop.permute.xlu0 %359
        %361 = vrot.lane.b32.xlu0 %v337, 1
        %v362 = vpop.permute.xlu0 %361
        %363 = vrot.lane.b32.xlu0 %v338, 1
        %v364 = vpop.permute.xlu0 %363
        %v365 = vmul.f32 %v350, %v292
        %v366 = vmul.f32 %v352, %v292
        %v367 = vmul.f32 %v354, %v292
        %v368 = vmul.f32 %v356, %v292
        %v369 = vmul.f32 %v358, %v292
        %v370 = vmul.f32 %v360, %v292
        %v371 = vmul.f32 %v362, %v292
        %v372 = vmul.f32 %v364, %v292
        %374 = vset.pattern.permute.xlu0 0
        %375 = vperm.xlu0 %374, %v299
        %v376 = vpop.permute.xlu0 %375
        %379 = vset.pattern.permute.xlu0 0
        %380 = vperm.xlu0 %379, %v300
        %v381 = vpop.permute.xlu0 %380
        %v383 = vmul.f32 %v376, %v365
        %v384 = vmul.f32 %v381, %v366
        %v385 = vmul.f32 %v376, %v367
        %v386 = vmul.f32 %v381, %v368
        %v387 = vmul.f32 %v376, %v369
        %v388 = vmul.f32 %v381, %v370
        %v389 = vmul.f32 %v376, %v371
        %v390 = vmul.f32 %v381, %v372
        %v391 = vadd.f32 %v342, %v383
        %v392 = vadd.f32 %v347, %v384
        %v393 = vadd.f32 %v342, %v385
        %v394 = vadd.f32 %v347, %v386
        %v395 = vadd.f32 %v342, %v387
        %v396 = vadd.f32 %v347, %v388
        %v397 = vadd.f32 %v342, %v389
        %v398 = vadd.f32 %v347, %v390
        %399 = vset.pattern.permute.xlu0 1
        %400 = vperm.xlu0 %399, %v299
        %v401 = vpop.permute.xlu0 %400
        %403 = vset.pattern.permute.xlu0 1
        %404 = vperm.xlu0 %403, %v300
        %v405 = vpop.permute.xlu0 %404
        %v407 = vmul.f32 %v401, %v331
        %v408 = vmul.f32 %v405, %v332
        %v409 = vmul.f32 %v401, %v333
        %v410 = vmul.f32 %v405, %v334
        %v411 = vmul.f32 %v401, %v335
        %v412 = vmul.f32 %v405, %v336
        %v413 = vmul.f32 %v401, %v337
        %v414 = vmul.f32 %v405, %v338
        %v415 = vadd.f32 %v391, %v407
        %v416 = vadd.f32 %v392, %v408
        %v417 = vadd.f32 %v393, %v409
        %v418 = vadd.f32 %v394, %v410
        %v419 = vadd.f32 %v395, %v411
        %v420 = vadd.f32 %v396, %v412
        %v421 = vadd.f32 %v397, %v413
        %v422 = vadd.f32 %v398, %v414
        %423 = vrot.lane.b32.xlu0 %v331, 127
        %v424 = vpop.permute.xlu0 %423
        %425 = vrot.lane.b32.xlu0 %v332, 127
        %v426 = vpop.permute.xlu0 %425
        %427 = vrot.lane.b32.xlu0 %v333, 127
        %v428 = vpop.permute.xlu0 %427
        %429 = vrot.lane.b32.xlu0 %v334, 127
        %v430 = vpop.permute.xlu0 %429
        %431 = vrot.lane.b32.xlu0 %v335, 127
        %v432 = vpop.permute.xlu0 %431
        %433 = vrot.lane.b32.xlu0 %v336, 127
        %v434 = vpop.permute.xlu0 %433
        %435 = vrot.lane.b32.xlu0 %v337, 127
        %v436 = vpop.permute.xlu0 %435
        %437 = vrot.lane.b32.xlu0 %v338, 127
        %v438 = vpop.permute.xlu0 %437
        %v439 = vmul.f32 %v424, %v298
        %v440 = vmul.f32 %v426, %v298
        %v441 = vmul.f32 %v428, %v298
        %v442 = vmul.f32 %v430, %v298
        %v443 = vmul.f32 %v432, %v298
        %v444 = vmul.f32 %v434, %v298
        %v445 = vmul.f32 %v436, %v298
        %v446 = vmul.f32 %v438, %v298
        %447 = vset.pattern.permute.xlu0 2
        %448 = vperm.xlu0 %447, %v299
        %v449 = vpop.permute.xlu0 %448
        %451 = vset.pattern.permute.xlu0 2
        %452 = vperm.xlu0 %451, %v300
        %v453 = vpop.permute.xlu0 %452
        %v455 = vmul.f32 %v449, %v439
        %v456 = vmul.f32 %v453, %v440
        %v457 = vmul.f32 %v449, %v441
        %v458 = vmul.f32 %v453, %v442
        %v459 = vmul.f32 %v449, %v443
        %v460 = vmul.f32 %v453, %v444
        %v461 = vmul.f32 %v449, %v445
        %v462 = vmul.f32 %v453, %v446
        %v463 = vadd.f32 %v415, %v455
        %v464 = vadd.f32 %v416, %v456
        %v465 = vadd.f32 %v417, %v457
        %v466 = vadd.f32 %v418, %v458
        %v467 = vadd.f32 %v419, %v459
        %v468 = vadd.f32 %v420, %v460
        %v469 = vadd.f32 %v421, %v461
        %v470 = vadd.f32 %v422, %v462
        %471 = vst [vmem:[%s281] sm:$0xff] %v463
        %472 = vst [vmem:[%s281 + $0x8] sm:$0xff] %v464
        %473 = vst [vmem:[%s281 + $0x10] sm:$0xff] %v465
        %474 = vst [vmem:[%s281 + $0x18] sm:$0xff] %v466
        %475 = vst [vmem:[%s281 + $0x20] sm:$0xff] %v467
        %476 = vst [vmem:[%s281 + $0x28] sm:$0xff] %v468
        %477 = vst [vmem:[%s281 + $0x30] sm:$0xff] %v469
        %478 = vst [vmem:[%s281 + $0x38] sm:$0xff] %v470
        %vm479 = vcmask 130048
        %v481 = vsel %vm479, %v303, 0
        %v484 = vsel %vm479, %v304, 0
        %v487 = vsel %vm479, %v305, 0
        %v490 = vsel %vm479, %v306, 0
        %492 = vmatprep.subr.mxu0 0.0
        %493 = vmatpush1.msra.mxu0 %v463
        %494 = vmatprep.subr.mxu0 0.0
        %495 = vmatpush1.msra.mxu0 %v464
        %496 = vmatprep.subr.mxu0 0.0
        %497 = vmatpush1.msra.mxu0 0.0
        %498 = vmatprep.subr.mxu0 0.0
        %499 = vmatpush1.msra.mxu0 0.0
        %500 = vmatprep.subr.mxu0 0.0
        %501 = vmatpush1.msra.mxu0 0.0
        %502 = vmatprep.subr.mxu0 0.0
        %503 = vmatpush1.msra.mxu0 0.0
        %504 = vmatprep.subr.mxu0 0.0
        %505 = vmatpush1.msra.mxu0 0.0
        %506 = vmatprep.subr.mxu0 0.0
        %507 = vmatpush1.msra.mxu0 0.0
        %508 = vmatprep.subr.mxu0 0.0
        %509 = vmatpush1.msra.mxu0 0.0
        %510 = vmatprep.subr.mxu0 0.0
        %511 = vmatpush1.msra.mxu0 0.0
        %512 = vmatprep.subr.mxu0 0.0
        %513 = vmatpush1.msra.mxu0 0.0
        %514 = vmatprep.subr.mxu0 0.0
        %515 = vmatpush1.msra.mxu0 0.0
        %516 = vmatprep.subr.mxu0 0.0
        %517 = vmatpush1.msra.mxu0 0.0
        %518 = vmatprep.subr.mxu0 0.0
        %519 = vmatpush1.msra.mxu0 0.0
        %520 = vmatprep.subr.mxu0 0.0
        %521 = vmatpush1.msra.mxu0 0.0
        %522 = vmatprep.subr.mxu0 0.0
        %523 = vmatpush1.msra.mxu0 0.0
        %524 = vmatprep.subr.mxu0 0.0
        %525 = vmatpush1.msra.mxu0 0.0
        %526 = vmatprep.subr.mxu0 0.0
        %527 = vmatpush1.msra.mxu0 0.0
        %528 = vmatprep.subr.mxu0 0.0
        %529 = vmatpush1.msra.mxu0 0.0
        %530 = vmatprep.subr.mxu0 0.0
        %531 = vmatpush1.msra.mxu0 0.0
        %532 = vmatprep.subr.mxu0 0.0
        %533 = vmatpush1.msra.mxu0 0.0
        %534 = vmatprep.subr.mxu0 0.0
        %535 = vmatpush1.msra.mxu0 0.0
        %536 = vmatprep.subr.mxu0 0.0
        %537 = vmatpush1.msra.mxu0 0.0
        %538 = vmatprep.subr.mxu0 0.0
        %539 = vmatpush1.msra.mxu0 0.0
        %540 = vmatprep.subr.mxu0 0.0
        %541 = vmatpush1.msra.mxu0 0.0
        %542 = vmatprep.subr.mxu0 0.0
        %543 = vmatpush1.msra.mxu0 0.0
        %544 = vmatprep.subr.mxu0 0.0
        %545 = vmatpush1.msra.mxu0 0.0
        %546 = vmatprep.subr.mxu0 0.0
        %547 = vmatpush1.msra.mxu0 0.0
        %548 = vmatprep.subr.mxu0 0.0
        %549 = vmatpush1.msra.mxu0 0.0
        %550 = vmatprep.subr.mxu0 0.0
        %551 = vmatpush1.msra.mxu0 0.0
        %552 = vmatprep.subr.mxu0 0.0
        %553 = vmatpush1.msra.mxu0 0.0
        %554 = vmatprep.subr.mxu0 0.0
        %555 = vmatpush1.msra.mxu0 0.0
        %556 = vmatprep.mubr.f32.mxu0 0.0
        %557 = vmatmul.mubr.f32.gmra.mrb[0].mxu0 %v481
        %v558 = vpop.f32.mrb[0].mxu0
        %v559 = vadd.f32 0.0, %v558
        %v560 = vpop.f32.mrb[0].mxu0
        %561 = vmatprep.mubr.f32.mxu0 0.0
        %562 = vmatmul.mubr.f32.gmra.mrb[0].mxu0 %v484
        %v563 = vpop.f32.mrb[0].mxu0
        %v564 = vadd.f32 0.0, %v563
        %v565 = vpop.f32.mrb[0].mxu0
        %566 = vmatprep.mubr.f32.mxu0 0.0
        %567 = vmatmul.mubr.f32.gmra.mrb[0].mxu0 %v487
        %v568 = vpop.f32.mrb[0].mxu0
        %v569 = vadd.f32 0.0, %v568
        %v570 = vpop.f32.mrb[0].mxu0
        %571 = vmatprep.mubr.f32.mxu0 0.0
        %572 = vmatmul.mubr.f32.gmra.mrb[0].mxu0 %v490
        %v573 = vpop.f32.mrb[0].mxu0
        %v574 = vadd.f32 0.0, %v573
        %v575 = vpop.f32.mrb[0].mxu0
        %576 = vdwg.mxu0
        %577 = vmatprep.subr.mxu0 0.0
        %578 = vmatpush1.msra.mxu0 %v465
        %579 = vmatprep.subr.mxu0 0.0
        %580 = vmatpush1.msra.mxu0 %v466
        %581 = vmatprep.subr.mxu0 0.0
        %582 = vmatpush1.msra.mxu0 0.0
        %583 = vmatprep.subr.mxu0 0.0
        %584 = vmatpush1.msra.mxu0 0.0
        %585 = vmatprep.subr.mxu0 0.0
        %586 = vmatpush1.msra.mxu0 0.0
        %587 = vmatprep.subr.mxu0 0.0
        %588 = vmatpush1.msra.mxu0 0.0
        %589 = vmatprep.subr.mxu0 0.0
        %590 = vmatpush1.msra.mxu0 0.0
        %591 = vmatprep.subr.mxu0 0.0
        %592 = vmatpush1.msra.mxu0 0.0
        %593 = vmatprep.subr.mxu0 0.0
        %594 = vmatpush1.msra.mxu0 0.0
        %595 = vmatprep.subr.mxu0 0.0
        %596 = vmatpush1.msra.mxu0 0.0
        %597 = vmatprep.subr.mxu0 0.0
        %598 = vmatpush1.msra.mxu0 0.0
        %599 = vmatprep.subr.mxu0 0.0
        %600 = vmatpush1.msra.mxu0 0.0
        %601 = vmatprep.subr.mxu0 0.0
        %602 = vmatpush1.msra.mxu0 0.0
        %603 = vmatprep.subr.mxu0 0.0
        %604 = vmatpush1.msra.mxu0 0.0
        %605 = vmatprep.subr.mxu0 0.0
        %606 = vmatpush1.msra.mxu0 0.0
        %607 = vmatprep.subr.mxu0 0.0
        %608 = vmatpush1.msra.mxu0 0.0
        %609 = vmatprep.subr.mxu0 0.0
        %610 = vmatpush1.msra.mxu0 0.0
        %611 = vmatprep.subr.mxu0 0.0
        %612 = vmatpush1.msra.mxu0 0.0
        %613 = vmatprep.subr.mxu0 0.0
        %614 = vmatpush1.msra.mxu0 0.0
        %615 = vmatprep.subr.mxu0 0.0
        %616 = vmatpush1.msra.mxu0 0.0
        %617 = vmatprep.subr.mxu0 0.0
        %618 = vmatpush1.msra.mxu0 0.0
        %619 = vmatprep.subr.mxu0 0.0
        %620 = vmatpush1.msra.mxu0 0.0
        %621 = vmatprep.subr.mxu0 0.0
        %622 = vmatpush1.msra.mxu0 0.0
        %623 = vmatprep.subr.mxu0 0.0
        %624 = vmatpush1.msra.mxu0 0.0
        %625 = vmatprep.subr.mxu0 0.0
        %626 = vmatpush1.msra.mxu0 0.0
        %627 = vmatprep.subr.mxu0 0.0
        %628 = vmatpush1.msra.mxu0 0.0
        %629 = vmatprep.subr.mxu0 0.0
        %630 = vmatpush1.msra.mxu0 0.0
        %631 = vmatprep.subr.mxu0 0.0
        %632 = vmatpush1.msra.mxu0 0.0
        %633 = vmatprep.subr.mxu0 0.0
        %634 = vmatpush1.msra.mxu0 0.0
        %635 = vmatprep.subr.mxu0 0.0
        %636 = vmatpush1.msra.mxu0 0.0
        %637 = vmatprep.subr.mxu0 0.0
        %638 = vmatpush1.msra.mxu0 0.0
        %639 = vmatprep.subr.mxu0 0.0
        %640 = vmatpush1.msra.mxu0 0.0
        %641 = vmatprep.mubr.f32.mxu0 0.0
        %642 = vmatmul.mubr.f32.gmra.mrb[0].mxu0 %v481
        %v643 = vpop.f32.mrb[0].mxu0
        %v644 = vadd.f32 0.0, %v643
        %v645 = vpop.f32.mrb[0].mxu0
        %646 = vmatprep.mubr.f32.mxu0 0.0
        %647 = vmatmul.mubr.f32.gmra.mrb[0].mxu0 %v484
        %v648 = vpop.f32.mrb[0].mxu0
        %v649 = vadd.f32 0.0, %v648
        %v650 = vpop.f32.mrb[0].mxu0
        %651 = vmatprep.mubr.f32.mxu0 0.0
        %652 = vmatmul.mubr.f32.gmra.mrb[0].mxu0 %v487
        %v653 = vpop.f32.mrb[0].mxu0
        %v654 = vadd.f32 0.0, %v653
        %v655 = vpop.f32.mrb[0].mxu0
        %656 = vmatprep.mubr.f32.mxu0 0.0
        %657 = vmatmul.mubr.f32.gmra.mrb[0].mxu0 %v490
        %v658 = vpop.f32.mrb[0].mxu0
        %v659 = vadd.f32 0.0, %v658
        %v660 = vpop.f32.mrb[0].mxu0
        %661 = vdwg.mxu0
        %662 = vmatprep.subr.mxu0 0.0
        %663 = vmatpush1.msra.mxu0 %v467
        %664 = vmatprep.subr.mxu0 0.0
        %665 = vmatpush1.msra.mxu0 %v468
        %666 = vmatprep.subr.mxu0 0.0
        %667 = vmatpush1.msra.mxu0 0.0
        %668 = vmatprep.subr.mxu0 0.0
        %669 = vmatpush1.msra.mxu0 0.0
        %670 = vmatprep.subr.mxu0 0.0
        %671 = vmatpush1.msra.mxu0 0.0
        %672 = vmatprep.subr.mxu0 0.0
        %673 = vmatpush1.msra.mxu0 0.0
        %674 = vmatprep.subr.mxu0 0.0
        %675 = vmatpush1.msra.mxu0 0.0
        %676 = vmatprep.subr.mxu0 0.0
        %677 = vmatpush1.msra.mxu0 0.0
        %678 = vmatprep.subr.mxu0 0.0
        %679 = vmatpush1.msra.mxu0 0.0
        %680 = vmatprep.subr.mxu0 0.0
        %681 = vmatpush1.msra.mxu0 0.0
        %682 = vmatprep.subr.mxu0 0.0
        %683 = vmatpush1.msra.mxu0 0.0
        %684 = vmatprep.subr.mxu0 0.0
        %685 = vmatpush1.msra.mxu0 0.0
        %686 = vmatprep.subr.mxu0 0.0
        %687 = vmatpush1.msra.mxu0 0.0
        %688 = vmatprep.subr.mxu0 0.0
        %689 = vmatpush1.msra.mxu0 0.0
        %690 = vmatprep.subr.mxu0 0.0
        %691 = vmatpush1.msra.mxu0 0.0
        %692 = vmatprep.subr.mxu0 0.0
        %693 = vmatpush1.msra.mxu0 0.0
        %694 = vmatprep.subr.mxu0 0.0
        %695 = vmatpush1.msra.mxu0 0.0
        %696 = vmatprep.subr.mxu0 0.0
        %697 = vmatpush1.msra.mxu0 0.0
        %698 = vmatprep.subr.mxu0 0.0
        %699 = vmatpush1.msra.mxu0 0.0
        %700 = vmatprep.subr.mxu0 0.0
        %701 = vmatpush1.msra.mxu0 0.0
        %702 = vmatprep.subr.mxu0 0.0
        %703 = vmatpush1.msra.mxu0 0.0
        %704 = vmatprep.subr.mxu0 0.0
        %705 = vmatpush1.msra.mxu0 0.0
        %706 = vmatprep.subr.mxu0 0.0
        %707 = vmatpush1.msra.mxu0 0.0
        %708 = vmatprep.subr.mxu0 0.0
        %709 = vmatpush1.msra.mxu0 0.0
        %710 = vmatprep.subr.mxu0 0.0
        %711 = vmatpush1.msra.mxu0 0.0
        %712 = vmatprep.subr.mxu0 0.0
        %713 = vmatpush1.msra.mxu0 0.0
        %714 = vmatprep.subr.mxu0 0.0
        %715 = vmatpush1.msra.mxu0 0.0
        %716 = vmatprep.subr.mxu0 0.0
        %717 = vmatpush1.msra.mxu0 0.0
        %718 = vmatprep.subr.mxu0 0.0
        %719 = vmatpush1.msra.mxu0 0.0
        %720 = vmatprep.subr.mxu0 0.0
        %721 = vmatpush1.msra.mxu0 0.0
        %722 = vmatprep.subr.mxu0 0.0
        %723 = vmatpush1.msra.mxu0 0.0
        %724 = vmatprep.subr.mxu0 0.0
        %725 = vmatpush1.msra.mxu0 0.0
        %726 = vmatprep.mubr.f32.mxu0 0.0
        %727 = vmatmul.mubr.f32.gmra.mrb[0].mxu0 %v481
        %v728 = vpop.f32.mrb[0].mxu0
        %v729 = vadd.f32 0.0, %v728
        %v730 = vpop.f32.mrb[0].mxu0
        %731 = vmatprep.mubr.f32.mxu0 0.0
        %732 = vmatmul.mubr.f32.gmra.mrb[0].mxu0 %v484
        %v733 = vpop.f32.mrb[0].mxu0
        %v734 = vadd.f32 0.0, %v733
        %v735 = vpop.f32.mrb[0].mxu0
        %736 = vmatprep.mubr.f32.mxu0 0.0
        %737 = vmatmul.mubr.f32.gmra.mrb[0].mxu0 %v487
        %v738 = vpop.f32.mrb[0].mxu0
        %v739 = vadd.f32 0.0, %v738
        %v740 = vpop.f32.mrb[0].mxu0
        %741 = vmatprep.mubr.f32.mxu0 0.0
        %742 = vmatmul.mubr.f32.gmra.mrb[0].mxu0 %v490
        %v743 = vpop.f32.mrb[0].mxu0
        %v744 = vadd.f32 0.0, %v743
        %v745 = vpop.f32.mrb[0].mxu0
        %746 = vdwg.mxu0
        %747 = vmatprep.subr.mxu0 0.0
        %748 = vmatpush1.msra.mxu0 %v469
        %749 = vmatprep.subr.mxu0 0.0
        %750 = vmatpush1.msra.mxu0 %v470
        %751 = vmatprep.subr.mxu0 0.0
        %752 = vmatpush1.msra.mxu0 0.0
        %753 = vmatprep.subr.mxu0 0.0
        %754 = vmatpush1.msra.mxu0 0.0
        %755 = vmatprep.subr.mxu0 0.0
        %756 = vmatpush1.msra.mxu0 0.0
        %757 = vmatprep.subr.mxu0 0.0
        %758 = vmatpush1.msra.mxu0 0.0
        %759 = vmatprep.subr.mxu0 0.0
        %760 = vmatpush1.msra.mxu0 0.0
        %761 = vmatprep.subr.mxu0 0.0
        %762 = vmatpush1.msra.mxu0 0.0
        %763 = vmatprep.subr.mxu0 0.0
        %764 = vmatpush1.msra.mxu0 0.0
        %765 = vmatprep.subr.mxu0 0.0
        %766 = vmatpush1.msra.mxu0 0.0
        %767 = vmatprep.subr.mxu0 0.0
        %768 = vmatpush1.msra.mxu0 0.0
        %769 = vmatprep.subr.mxu0 0.0
        %770 = vmatpush1.msra.mxu0 0.0
        %771 = vmatprep.subr.mxu0 0.0
        %772 = vmatpush1.msra.mxu0 0.0
        %773 = vmatprep.subr.mxu0 0.0
        %774 = vmatpush1.msra.mxu0 0.0
        %775 = vmatprep.subr.mxu0 0.0
        %776 = vmatpush1.msra.mxu0 0.0
        %777 = vmatprep.subr.mxu0 0.0
        %778 = vmatpush1.msra.mxu0 0.0
        %779 = vmatprep.subr.mxu0 0.0
        %780 = vmatpush1.msra.mxu0 0.0
        %781 = vmatprep.subr.mxu0 0.0
        %782 = vmatpush1.msra.mxu0 0.0
        %783 = vmatprep.subr.mxu0 0.0
        %784 = vmatpush1.msra.mxu0 0.0
        %785 = vmatprep.subr.mxu0 0.0
        %786 = vmatpush1.msra.mxu0 0.0
        %787 = vmatprep.subr.mxu0 0.0
        %788 = vmatpush1.msra.mxu0 0.0
        %789 = vmatprep.subr.mxu0 0.0
        %790 = vmatpush1.msra.mxu0 0.0
        %791 = vmatprep.subr.mxu0 0.0
        %792 = vmatpush1.msra.mxu0 0.0
        %793 = vmatprep.subr.mxu0 0.0
        %794 = vmatpush1.msra.mxu0 0.0
        %795 = vmatprep.subr.mxu0 0.0
        %796 = vmatpush1.msra.mxu0 0.0
        %797 = vmatprep.subr.mxu0 0.0
        %798 = vmatpush1.msra.mxu0 0.0
        %799 = vmatprep.subr.mxu0 0.0
        %800 = vmatpush1.msra.mxu0 0.0
        %801 = vmatprep.subr.mxu0 0.0
        %802 = vmatpush1.msra.mxu0 0.0
        %803 = vmatprep.subr.mxu0 0.0
        %804 = vmatpush1.msra.mxu0 0.0
        %805 = vmatprep.subr.mxu0 0.0
        %806 = vmatpush1.msra.mxu0 0.0
        %807 = vmatprep.subr.mxu0 0.0
        %808 = vmatpush1.msra.mxu0 0.0
        %809 = vmatprep.subr.mxu0 0.0
        %810 = vmatpush1.msra.mxu0 0.0
        %811 = vmatprep.mubr.f32.mxu0 0.0
        %812 = vmatmul.mubr.f32.gmra.mrb[0].mxu0 %v481
        %v813 = vpop.f32.mrb[0].mxu0
        %v814 = vadd.f32 0.0, %v813
        %v815 = vpop.f32.mrb[0].mxu0
        %816 = vmatprep.mubr.f32.mxu0 0.0
        %817 = vmatmul.mubr.f32.gmra.mrb[0].mxu0 %v484
        %v818 = vpop.f32.mrb[0].mxu0
        %v819 = vadd.f32 0.0, %v818
        %v820 = vpop.f32.mrb[0].mxu0
        %821 = vmatprep.mubr.f32.mxu0 0.0
        %822 = vmatmul.mubr.f32.gmra.mrb[0].mxu0 %v487
        %v823 = vpop.f32.mrb[0].mxu0
        %v824 = vadd.f32 0.0, %v823
        %v825 = vpop.f32.mrb[0].mxu0
        %826 = vmatprep.mubr.f32.mxu0 0.0
        %827 = vmatmul.mubr.f32.gmra.mrb[0].mxu0 %v490
        %v828 = vpop.f32.mrb[0].mxu0
        %v829 = vadd.f32 0.0, %v828
        %v830 = vpop.f32.mrb[0].mxu0
        %831 = vdwg.mxu0
        %v832 = vadd.f32 %v314, %v559
        %v833 = vadd.f32 %v319, %v564
        %v834 = vadd.f32 %v324, %v569
        %v835 = vadd.f32 %v329, %v574
        %v836 = vadd.f32 %v314, %v644
        %v837 = vadd.f32 %v319, %v649
        %v838 = vadd.f32 %v324, %v654
        %v839 = vadd.f32 %v329, %v659
        %v840 = vadd.f32 %v314, %v729
        %v841 = vadd.f32 %v319, %v734
        %v842 = vadd.f32 %v324, %v739
        %v843 = vadd.f32 %v329, %v744
        %v844 = vadd.f32 %v314, %v814
        %v845 = vadd.f32 %v319, %v819
        %v846 = vadd.f32 %v324, %v824
        %v847 = vadd.f32 %v329, %v829
        %848 = vst [vmem:[%s274] sm:$0xff] %v832
        %849 = vst [vmem:[%s274 + $0x8] sm:$0xff] %v833
        %850 = vst [vmem:[%s274 + $0x10] sm:$0xff] %v834
        %851 = vst [vmem:[%s274 + $0x18] sm:$0xff] %v835
        %852 = vst [vmem:[%s274 + $0x20] sm:$0xff] %v836
        %853 = vst [vmem:[%s274 + $0x28] sm:$0xff] %v837
        %854 = vst [vmem:[%s274 + $0x30] sm:$0xff] %v838
        %855 = vst [vmem:[%s274 + $0x38] sm:$0xff] %v839
        %856 = vst [vmem:[%s274 + $0x40] sm:$0xff] %v840
        %857 = vst [vmem:[%s274 + $0x48] sm:$0xff] %v841
        %858 = vst [vmem:[%s274 + $0x50] sm:$0xff] %v842
        %859 = vst [vmem:[%s274 + $0x58] sm:$0xff] %v843
        %860 = vst [vmem:[%s274 + $0x60] sm:$0xff] %v844
        %861 = vst [vmem:[%s274 + $0x68] sm:$0xff] %v845
        %862 = vst [vmem:[%s274 + $0x70] sm:$0xff] %v846
        %863 = vst [vmem:[%s274 + $0x78] sm:$0xff] %v847
        %s864 = sand.u32 %s145, 1
        %s865 = scalar_lea.sflag [#allocation4], %s864
        %s866 = sand.u32 %s145, 1
        %s867 = smul.addr %s866, 128
        %s868 = scalar_lea.vmem [#allocation5], %s867
        %s869 = sand.u32 %s171, 1
        %s870 = scalar_lea.sflag [#allocation7], %s869
        %s871 = sand.u32 %s171, 1
        %s872 = smul.addr %s871, 64
        %s873 = scalar_lea.vmem [#allocation6], %s872
        // Predicated region
        $region45: #{tpu_custom_call.1} parent=39 // pred_check
          %p874 = pneg %p155
        $region46: #{tpu_custom_call.1} parent=39 // pred_check_branch
          %876 = sbr.rel (%p874) target = $region48
        $region47: #{tpu_custom_call.1} parent=39 // pred_region
          %s877 = smul.u32 4, %s27
          %s879 = ssub.s32 2048, 2048
          %880 = vsyncadd %s865, %s879
          %s881 = smul.addr %s877, 4
          %s882 = smul.addr %s881, 128
          %s883 = scalar_lea.hbm %s5, %s882
          %s884 = sshll.u32 %s868, 4
          %s885 = int_to_ptr.vmem [resolvable:$true] %s884
          %890 = dma.vmem_to_hbm [thread:$0]  %s885, 2048, %s883, %s865, 128, 128, 8
        $region48: #{tpu_custom_call.1} parent=39 // pred_fallthru
          _
        // Predicated region
        $region49: #{tpu_custom_call.1} parent=39 // pred_check
          %p891 = pneg %p181
        $region50: #{tpu_custom_call.1} parent=39 // pred_check_branch
          %893 = sbr.rel (%p891) target = $region52
        $region51: #{tpu_custom_call.1} parent=39 // pred_region
          %s894 = smul.u32 4, %s27
          %s896 = ssub.s32 1024, 1024
          %897 = vsyncadd %s870, %s896
          %s898 = smul.addr %s894, 2
          %s899 = smul.addr %s898, 128
          %s900 = scalar_lea.hbm %s6, %s899
          %s901 = sshll.u32 %s873, 4
          %s902 = int_to_ptr.vmem [resolvable:$true] %s901
          %907 = dma.vmem_to_hbm [thread:$0]  %s902, 1024, %s900, %s870, 128, 128, 8
        $region52: #{tpu_custom_call.1} parent=39 // pred_fallthru
          _
      $region40: #{tpu_custom_call.1} parent=5 // pred_fallthru
        _
      %p908 = scmp.le.s32.totalorder 2, %s22
      // Predicated region
      $region53: #{tpu_custom_call.1} parent=5 // pred_check
        %p909 = pneg %p908
      $region54: #{tpu_custom_call.1} parent=5 // pred_check_branch
        %911 = sbr.rel (%p909) target = $region56
      $region55: #{tpu_custom_call.1} parent=5 // pred_region
        %s912 = ssub.s32 %s22, 2
        // Predicated region
        $region57: #{tpu_custom_call.1} parent=55 // pred_check
          %p913 = pneg %p161
        $region58: #{tpu_custom_call.1} parent=55 // pred_check_branch
          %915 = sbr.rel (%p913) target = $region60
        $region59: #{tpu_custom_call.1} parent=55 // pred_region
          %s916 = sand.u32 %s146, 1
          %s917 = scalar_lea.sflag [#allocation4], %s916
          %s918 = sand.u32 %s146, 1
          %s919 = smul.addr %s918, 128
          %s920 = scalar_lea.vmem [#allocation5], %s919
          %921 = dma.done %s917, 2048
        $region60: #{tpu_custom_call.1} parent=55 // pred_fallthru
          _
        // Predicated region
        $region61: #{tpu_custom_call.1} parent=55 // pred_check
          %p922 = pneg %p187
        $region62: #{tpu_custom_call.1} parent=55 // pred_check_branch
          %924 = sbr.rel (%p922) target = $region64
        $region63: #{tpu_custom_call.1} parent=55 // pred_region
          %s925 = sand.u32 %s172, 1
          %s926 = scalar_lea.sflag [#allocation7], %s925
          %s927 = sand.u32 %s172, 1
          %s928 = smul.addr %s927, 64
          %s929 = scalar_lea.vmem [#allocation6], %s928
          %930 = dma.done %s926, 1024
        $region64: #{tpu_custom_call.1} parent=55 // pred_fallthru
          _
      $region56: #{tpu_custom_call.1} parent=5 // pred_fallthru
        _
    $region6: #{tpu_custom_call.1} parent=1 // loop_footer
      %s26 = sadd.s32 1, %s22
    $region7: #{tpu_custom_call.1} parent=1 // loop_footer_branch
      %21 = sbr.rel target = $region3
    $region8: #{tpu_custom_call.1} parent=1 // loop_exit
      _
    %931 = vsyncpa [#allocation3], 1
    %s932 = scalar_lea.sflag [#allocation3], 1
    %933 = vsyncpa %s932, 1
    %934 = vsyncpa [#allocation4], 1
    %s935 = scalar_lea.sflag [#allocation4], 1
    %936 = vsyncpa %s935, 1
    %937 = vsyncpa [#allocation7], 1
    %s938 = scalar_lea.sflag [#allocation7], 1
    %939 = vsyncpa %s938, 1

</llo_original>
